<compile_context>
chip_gen: v6e
topology: v6e:2x2x1
jax: 0.10.0
libtpu: 0.0.40
codegen_flags: <defaults>
</compile_context>

<pallas_src>
import functools
import math

import jax
import jax.numpy as jnp
from jax.experimental import pallas as pl
from jax.experimental.pallas import tpu as pltpu


def _round_up(x, m):
    return (x + m - 1) // m * m


def _tpu_topology():
    """Best-effort (tensorcores_per_chip, physical_vmem_bytes) with safe fallbacks."""
    num_cores = 1
    vmem_cap = 64 * 1024 * 1024            # conservative floor (v7x per-TC VMEM)
    try:
        info = pltpu.get_tpu_info()
        vmem_cap = int(getattr(info, "vmem_capacity_bytes", vmem_cap))
        for name in ("num_cores", "core_count", "tensorcore_count", "num_tensorcores"):
            v = getattr(info, name, None)
            if isinstance(v, int) and v > 0:
                num_cores = v
                break
    except Exception:
        pass
    if num_cores == 1:
        try:
            kind = jax.devices()[0].device_kind.lower()
            if "v7" in kind:               # v7x exposes 2 TensorCores per chip
                num_cores = 2
        except Exception:
            pass
    return max(1, min(num_cores, 2)), vmem_cap


def _choose_block_b(B, Tx, H2c, P, L, cbytes, num_cores, vmem_cap, block_b):
    """Pick the per-step batch block bt (multiple of 8, VMEM-budgeted)."""

    def step_bytes(bt):
        # double-buffered LHS block + double-buffered output slab + fused weights
        lhs = bt * (Tx + 1) * H2c * cbytes
        out = bt * L * 4
        w = H2c * 4 * P * cbytes
        return 2 * lhs + 2 * out + w

    b_ceil = _round_up(B, 8)
    if block_b is not None:
        bt = min(_round_up(max(int(block_b), 1), 8), b_ceil)
    else:
        # ~512 fused-matmul rows per grid step amortizes the ~0.35us/step
        # pipeline overhead and fills the MXU M dimension.
        bt = min(_round_up(max(1, 512 // (Tx + 1)), 8), b_ceil)
        if num_cores > 1:
            # Keep >= num_cores grid steps (megacore balance) only if each
            # step still sees a reasonably fat matmul.
            bt_split = min(bt, _round_up(pl.cdiv(B, num_cores), 8))
            if bt_split * (Tx + 1) >= 256:
                bt = bt_split
    # VMEM budget per double-buffered step: half the physical capacity,
    # capped at 64 MiB (=> ~32 MiB on v7x's 64 MiB VMEM, ~64 MiB on v5e/v6e).
    budget = min(vmem_cap // 2, 64 * 1024 * 1024)
    while bt > 8 and step_bytes(bt) > budget:
        bt -= 8
    return bt, step_bytes(bt)


def _dot_attention_kernel(lhs_ref, wqkv_ref, out_ref, *, bt, tx, p, l):
    """One grid step handles `bt` batch elements.

    lhs_ref  : (bt*(Tx+1), 2H+1) compute dtype.  Rows [0, bt) are the H->2H
               zero-padded query rows, rows [bt, bt*(Tx+1)) are the key rows
               (Tx consecutive rows per batch element); last column is 1.0 so
               the bias row of `wqkv` is folded into the matmul.
    wqkv_ref : (2H+1, 4P) compute dtype.  Columns [Q | K | V]; Wq carries the
               1/sqrt(P) score scale; row 2H holds [bq*scale | bk | bv].
    out_ref  : (bt, L) f32, L = round_up(2P+Tx, 128); per-row layout is
               [context (2P) | weights (Tx) | zero pad].
    """
    # Single fused projection: queries + keys + values in one MXU pass.
    mod = jnp.dot(lhs_ref[...], wqkv_ref[...],
                  preferred_element_type=jnp.float32)            # (R, 4P) f32

    mod_q = mod[:bt, :p]                                         # (bt, P)
    kv = mod[bt:, :]                                             # (bt*Tx, 4P)
    mod_k = kv[:, p:2 * p].reshape(bt, tx, p)                    # (bt, Tx, P)
    mod_v = kv[:, 2 * p:].reshape(bt, tx, 2 * p)                 # (bt, Tx, 2P)

    # Scores on the VPU (mul) + XLU (reduce): 1-row-per-batch MXU pushes
    # would badly underfill the matrix unit at these shapes.
    scores = jnp.sum(mod_q[:, None, :] * mod_k, axis=-1)         # (bt, Tx)

    # TODO(synk): the reference's masked_fill is NOT in-place and its result
    # is discarded, so no padding mask is applied here (matches the PyTorch
    # forward exactly, padded key positions intentionally leak into softmax).

    # Numerically stable softmax over Tx; exact divide so weights sum to 1.
    m = jnp.max(scores, axis=-1, keepdims=True)
    e = jnp.exp(scores - m)
    weights = e / jnp.sum(e, axis=-1, keepdims=True)             # (bt, Tx)

    # Context: weighted sum of values, again VPU mul + XLU reduce.
    context = jnp.sum(weights[:, :, None] * mod_v, axis=1)       # (bt, 2P)

    # Pack context + weights into one lane-dense slab; single full store.
    pieces = [context, weights]
    pad = l - (2 * p + tx)
    if pad > 0:
        pieces.append(jnp.zeros((bt, pad), jnp.float32))
    out_ref[...] = jnp.concatenate(pieces, axis=-1)


def dot_attention(query, keys, params, *, block_b=None, compute_dtype=jnp.bfloat16):
    """query: (B, 1, H); keys: (B, Tx, 2H).

    Returns (context (B, 1, 2P) f32, weights (B, 1, Tx) f32)."""
    B, one, H = query.shape
    assert one == 1
    Bk, Tx, H2 = keys.shape
    assert Bk == B and H2 == 2 * H

    wq, bq = params["wq"], params["bq"]   # (H, P), (1, P)
    wk, bk = params["wk"], params["bk"]   # (2H, P), (1, P)
    wv, bv = params["wv"], params["bv"]   # (2H, 2P), (1, 2P)
    P = wq.shape[1]
    scale = 1.0 / math.sqrt(P)

    H2c = H2 + 1                          # +1 ones column folds the biases in
    L = _round_up(2 * P + Tx, 128)        # lane-dense packed output width
    cbytes = jnp.dtype(compute_dtype).itemsize

    num_cores, vmem_cap = _tpu_topology()
    bt, step_bytes = _choose_block_b(B, Tx, H2c, P, L, cbytes,
                                     num_cores, vmem_cap, block_b)
    nblk = pl.cdiv(B, bt)
    B_pad = nblk * bt
    R = bt * (Tx + 1)

    # ---- fused RHS: (2H+1, 4P), columns [Q | K | V], last row = biases -----
    # 1/sqrt(P) score scale folded into the Q section at trace time.
    # NOTE: K/V column sections start at lanes P/2P; padding Q|K to a 128-lane
    # boundary (v6e/v7x-only XLU-slice optimization) is deliberately skipped
    # since it would force a second MXU pass on v5e.
    wq_pad = jnp.concatenate([wq * scale, jnp.zeros((H, P), wq.dtype)], axis=0)  # (2H, P)
    w_top = jnp.concatenate([wq_pad, wk, wv], axis=1)                            # (2H, 4P)
    b_row = jnp.concatenate([bq * scale, bk, bv], axis=1)                        # (1, 4P)
    wqkv = jnp.concatenate([w_top, b_row], axis=0).astype(compute_dtype)         # (2H+1, 4P)

    # ---- staged LHS: per block, bt padded query rows then bt*Tx key rows ----
    q_rows = jnp.concatenate(
        [query.reshape(B, H),
         jnp.zeros((B, H), query.dtype),
         jnp.ones((B, 1), query.dtype)], axis=1)                  # (B, 2H+1)
    q_rows = jnp.pad(q_rows, ((0, B_pad - B), (0, 0)))
    keys_p = jnp.pad(keys, ((0, B_pad - B), (0, 0), (0, 0)))
    k_rows = jnp.concatenate(
        [keys_p.reshape(B_pad * Tx, H2),
         jnp.ones((B_pad * Tx, 1), keys.dtype)], axis=1)          # (B_pad*Tx, 2H+1)
    lhs = jnp.concatenate(
        [q_rows.reshape(nblk, bt, H2c),
         k_rows.reshape(nblk, bt * Tx, H2c)], axis=1
    ).reshape(nblk * R, H2c).astype(compute_dtype)                # (nblk*R, 2H+1)

    kernel = functools.partial(_dot_attention_kernel, bt=bt, tx=Tx, p=P, l=L)

    # Derive the scoped-VMEM limit from the actual block footprint (+headroom),
    # capped well below the chip's physical VMEM.
    vmem_limit = int(min(max(2 * step_bytes, 16 * 1024 * 1024),
                         max(vmem_cap * 3 // 4, 16 * 1024 * 1024)))

    grid_spec = pltpu.PrefetchScalarGridSpec(
        num_scalar_prefetch=0,
        grid=(nblk,),
        in_specs=[
            pl.BlockSpec((R, H2c), lambda b: (b, 0)),         # fused LHS block
            pl.BlockSpec((H2c, 4 * P), lambda b: (0, 0)),     # fused weights
        ],
        out_specs=pl.BlockSpec((bt, L), lambda b: (b, 0)),
    )

    packed = pl.pallas_call(
        kernel,
        out_shape=jax.ShapeDtypeStruct((nblk * bt, L), jnp.float32),
        grid_spec=grid_spec,
        compiler_params=pltpu.CompilerParams(
            dimension_semantics=("parallel",),
            vmem_limit_bytes=vmem_limit,
        ),
    )(lhs, wqkv)

    context = packed[:B, :2 * P].reshape(B, 1, 2 * P)
    weights = packed[:B, 2 * P:2 * P + Tx].reshape(B, 1, Tx)
    return context, weights


def _reference(query, keys, params):
    """Pure-JAX f32 reference reproducing the PyTorch forward."""
    mod_k = keys @ params["wk"] + params["bk"]
    mod_q = query @ params["wq"] + params["bq"]
    mod_v = keys @ params["wv"] + params["bv"]
    P = params["wq"].shape[1]
    scores = jnp.einsum("bqp,bkp->bqk", mod_q, mod_k) / math.sqrt(P)
    # masked_fill in the torch code is not in-place and its result is dropped,
    # so no masking here either.
    weights = jax.nn.softmax(scores, axis=-1)
    context = weights @ mod_v
    return context, weights


def init_params(key, hidden_size, head_size):
    """Deterministic synthetic parameter init (shapes follow nn.Linear)."""
    ks = jax.random.split(key, 6)

    def linear(kw, kb, fan_in, fan_out):
        bound = 1.0 / math.sqrt(fan_in)
        w = jax.random.uniform(kw, (fan_in, fan_out), jnp.float32, -bound, bound)
        b = jax.random.uniform(kb, (1, fan_out), jnp.float32, -bound, bound)
        return w, b

    wq, bq = linear(ks[0], ks[1], hidden_size, head_size)
    wk, bk = linear(ks[2], ks[3], 2 * hidden_size, head_size)
    wv, bv = linear(ks[4], ks[5], 2 * hidden_size, 2 * head_size)
    return {"wq": wq, "bq": bq, "wk": wk, "bk": bk, "wv": wv, "bv": bv}


def _check(B, Tx, hidden_size, head_size, key, block_b=None):
    kq, kk, kp = jax.random.split(key, 3)
    query = jax.random.normal(kq, (B, 1, hidden_size), jnp.float32)
    keys = jax.random.normal(kk, (B, Tx, 2 * hidden_size), jnp.float32)
    # Zero out one key row to exercise the (no-op) mask path deterministically.
    keys = keys.at[B - 1, -1, :].set(0.0)
    params = init_params(kp, hidden_size, head_size)

    ctx_ref, w_ref = _reference(query, keys, params)

    # f32 compute path: tight check of kernel structure.
    ctx32, w32 = dot_attention(query, keys, params, block_b=block_b,
                               compute_dtype=jnp.float32)
    jax.block_until_ready((ctx32, w32))
    assert ctx32.shape == (B, 1, 2 * head_size)
    assert w32.shape == (B, 1, Tx)
    assert jnp.allclose(ctx32, ctx_ref, atol=1e-2, rtol=1e-2)
    assert jnp.allclose(w32, w_ref, atol=1e-2, rtol=1e-2)

    # Default bf16 fast path: checked at bf16-appropriate tolerance.
    ctx, w = dot_attention(query, keys, params, block_b=block_b)
    jax.block_until_ready((ctx, w))
    assert ctx.shape == (B, 1, 2 * head_size)
    assert w.shape == (B, 1, Tx)
    assert jnp.allclose(ctx, ctx_ref, atol=5e-2, rtol=5e-2)
    assert jnp.allclose(w, w_ref, atol=5e-2, rtol=5e-2)


if __name__ == "__main__":
    key = jax.random.PRNGKey(0)
    k1, k2, k3 = jax.random.split(key, 3)

    # Even batch (bt=8, single fused grid step).
    _check(B=8, Tx=8, hidden_size=32, head_size=16, key=k1)
    # Odd batch (exercises the batch-padding path).
    _check(B=5, Tx=8, hidden_size=32, head_size=16, key=k2)
    # Larger batch with an explicit block size (exercises the multi-block grid
    # and the per-block [queries | keys] staging / index_map).
    _check(B=24, Tx=8, hidden_size=32, head_size=16, key=k3, block_b=8)

    print("KERNEL_OK")
</pallas_src>

<mosaic_0001>
module attributes {stable_mosaic.version = 11 : i64} {
  func.func @_dot_attention_kernel(%arg0: i32, %arg1: memref<72x65xf32, #tpu.memory_space<vmem>>, %arg2: memref<65x64xf32, #tpu.memory_space<vmem>>, %arg3: memref<8x128xf32, #tpu.memory_space<vmem>>) attributes {dimension_semantics = [#tpu.dimension_semantics<parallel>], iteration_bounds = array<i64: 1>, scalar_prefetch = 0 : i64, scratch_operands = 0 : i64, tpu.core_type = #tpu.core_type<tc>, window_params = [{transform_indices = @transform_0, window_bounds = array<i64: 72, 65>}, {pipeline_mode = #tpu.pipeline_mode<synchronous>, transform_indices = @transform_1, window_bounds = array<i64: 65, 64>}, {transform_indices = @transform_2, window_bounds = array<i64: 8, 128>}]} {
    %c0 = arith.constant 0 : index
    %c0_0 = arith.constant 0 : index
    %0 = vector.load %arg1[%c0, %c0_0] : memref<72x65xf32, #tpu.memory_space<vmem>>, vector<72x65xf32>
    %c0_1 = arith.constant 0 : index
    %c0_2 = arith.constant 0 : index
    %1 = vector.load %arg2[%c0_1, %c0_2] : memref<65x64xf32, #tpu.memory_space<vmem>>, vector<65x64xf32>
    %cst = arith.constant dense<0.000000e+00> : vector<72x64xf32>
    %2 = tpu.matmul %0, %1, %cst {dimension_numbers = #tpu.dot_dimension_numbers<[1], [0], [0], [1], [0, 0, 1, 1], [], []>} : vector<72x65xf32>, vector<65x64xf32>, vector<72x64xf32> -> vector<72x64xf32>
    %3 = vector.extract_strided_slice %2 {offsets = [0, 0], sizes = [8, 16], strides = [1, 1]} : vector<72x64xf32> to vector<8x16xf32>
    %4 = vector.extract_strided_slice %2 {offsets = [8, 0], sizes = [64, 64], strides = [1, 1]} : vector<72x64xf32> to vector<64x64xf32>
    %5 = vector.extract_strided_slice %4 {offsets = [0, 16], sizes = [64, 16], strides = [1, 1]} : vector<64x64xf32> to vector<64x16xf32>
    %6 = vector.shape_cast %5 : vector<64x16xf32> to vector<8x8x16xf32>
    %7 = vector.extract_strided_slice %4 {offsets = [0, 32], sizes = [64, 32], strides = [1, 1]} : vector<64x64xf32> to vector<64x32xf32>
    %8 = vector.shape_cast %7 : vector<64x32xf32> to vector<8x8x32xf32>
    %9 = vector.shape_cast %3 : vector<8x16xf32> to vector<8x1x16xf32>
    %10 = vector.broadcast %9 : vector<8x1x16xf32> to vector<8x8x16xf32>
    %11 = arith.mulf %10, %6 : vector<8x8x16xf32>
    %cst_3 = arith.constant dense<0.000000e+00> : vector<8x8xf32>
    %12 = vector.multi_reduction <add>, %11, %cst_3 [2] : vector<8x8x16xf32> to vector<8x8xf32>
    %cst_4 = arith.constant dense<0xFF800000> : vector<8xf32>
    %13 = vector.multi_reduction <maximumf>, %12, %cst_4 [1] : vector<8x8xf32> to vector<8xf32>
    %14 = vector.shape_cast %13 : vector<8xf32> to vector<8x1xf32>
    %15 = vector.broadcast %14 : vector<8x1xf32> to vector<8x8xf32>
    %16 = arith.subf %12, %15 : vector<8x8xf32>
    %17 = math.exp %16 : vector<8x8xf32>
    %cst_5 = arith.constant dense<0.000000e+00> : vector<8xf32>
    %18 = vector.multi_reduction <add>, %17, %cst_5 [1] : vector<8x8xf32> to vector<8xf32>
    %19 = vector.shape_cast %18 : vector<8xf32> to vector<8x1xf32>
    %20 = vector.broadcast %19 : vector<8x1xf32> to vector<8x8xf32>
    %21 = arith.divf %17, %20 : vector<8x8xf32>
    %22 = vector.shape_cast %21 : vector<8x8xf32> to vector<8x8x1xf32>
    %23 = vector.broadcast %22 : vector<8x8x1xf32> to vector<8x8x32xf32>
    %24 = arith.mulf %23, %8 : vector<8x8x32xf32>
    %cst_6 = arith.constant dense<0.000000e+00> : vector<8x32xf32>
    %25 = vector.multi_reduction <add>, %24, %cst_6 [1] : vector<8x8x32xf32> to vector<8x32xf32>
    %cst_7 = arith.constant 0.000000e+00 : f32
    %26 = vector.broadcast %cst_7 : f32 to vector<8x88xf32>
    %27 = tpu.concatenate %25, %21, %26 in 1 : vector<8x32xf32>, vector<8x8xf32>, vector<8x88xf32> -> vector<8x128xf32>
    %c0_8 = arith.constant 0 : index
    %c0_9 = arith.constant 0 : index
    %28 = vector.load %arg3[%c0_8, %c0_9] : memref<8x128xf32, #tpu.memory_space<vmem>>, vector<8x128xf32>
    tpu.vector_store %arg3[%c0_8, %c0_9], %27 {strides = array<i32>} : memref<8x128xf32, #tpu.memory_space<vmem>>, vector<8x128xf32>,
    return
  }
  func.func @transform_0(%arg0: i32) -> (i32, i32) {
    %c0_i32 = arith.constant 0 : i32
    %c0_i32_0 = arith.constant 0 : i32
    return %arg0, %c0_i32 : i32, i32
  }
  func.func @transform_1(%arg0: i32) -> (i32, i32) {
    %c0_i32 = arith.constant 0 : i32
    %c0_i32_0 = arith.constant 0 : i32
    %c0_i32_1 = arith.constant 0 : i32
    return %c0_i32, %c0_i32_0 : i32, i32
  }
  func.func @transform_2(%arg0: i32) -> (i32, i32) {
    %c0_i32 = arith.constant 0 : i32
    %c0_i32_0 = arith.constant 0 : i32
    return %arg0, %c0_i32 : i32, i32
  }
}

</mosaic_0001>

<llo_original>
// kernel: tpu_custom_call.1
$region0: #{tpu_custom_call.1}
  #allocation0 [shape = 'u32[]', space=smem, size = 0x4, offset = 0x4, fixed_abs, tag = 'smem constant byte address 0x4 - core index']
  #allocation1 [shape = 'u32[144,128]{1,0:T(1,128)}', space=vmem, size = 0x12000, scoped, tag = 'internal scratch']
  %s0 = inlined_call_operand.vmem [shape: f32[72,65], index: 0, kind: input, shape index: {}]
  %s1 = inlined_call_operand.vmem [shape: f32[65,64], index: 1, kind: input, shape index: {}]
  %s2 = inlined_call_operand.hbm [shape: f32[8,128], index: 2, kind: output, shape index: {}]
  %s3 = sld [smem:[#allocation0]]
  $region18: #{tpu_custom_call.1} parent=0
    _
  %s5 = ssub.s32 1, %s3
  %s6 = scalar_select 0, %s5, %s3
  $region1: #{tpu_custom_call.1} parent=0
    #allocation2 [shape = 'u8[4096]{0}', space=vmem, size = 0x1000, scoped, tag = 'output window, operand 0, single buffered']
    #allocation3 [shape = 's32[1]{0}', space=sflag, size = 0x4, scoped, tag = 'scoped memory for tpu_custom_call.1']
    %7 = vsyncpa [#allocation3], 0
    // Predicated region
    $region2: #{tpu_custom_call.1} parent=1 // pred_check
      _
    $region3: #{tpu_custom_call.1} parent=1 // pred_check_branch
      %9 = sbr.rel (0) target = $region5
    $region4: #{tpu_custom_call.1} parent=1 // pred_region
      _
    $region5: #{tpu_custom_call.1} parent=1 // pred_fallthru
      _
    // Predicated region
    $region6: #{tpu_custom_call.1} parent=1 // pred_check
      _
    $region7: #{tpu_custom_call.1} parent=1 // pred_check_branch
      %11 = sbr.rel (0) target = $region9
    $region8: #{tpu_custom_call.1} parent=1 // pred_region
      _
    $region9: #{tpu_custom_call.1} parent=1 // pred_fallthru
      _
    %v12 = vld [vmem:[%s0] sm:$0xff]
    %v13 = vld [vmem:[%s0 + $0x8] sm:$0xff]
    %v14 = vld [vmem:[%s0 + $0x10] sm:$0xff]
    %v15 = vld [vmem:[%s0 + $0x18] sm:$0xff]
    %v16 = vld [vmem:[%s0 + $0x20] sm:$0xff]
    %v17 = vld [vmem:[%s0 + $0x28] sm:$0xff]
    %v18 = vld [vmem:[%s0 + $0x30] sm:$0xff]
    %v19 = vld [vmem:[%s0 + $0x38] sm:$0xff]
    %v20 = vld [vmem:[%s0 + $0x40] sm:$0xff]
    %v21 = vld [vmem:[%s1] sm:$0xff]
    %v22 = vld [vmem:[%s1 + $0x8] sm:$0xff]
    %v23 = vld [vmem:[%s1 + $0x10] sm:$0xff]
    %v24 = vld [vmem:[%s1 + $0x18] sm:$0xff]
    %v25 = vld [vmem:[%s1 + $0x20] sm:$0xff]
    %v26 = vld [vmem:[%s1 + $0x28] sm:$0xff]
    %v27 = vld [vmem:[%s1 + $0x30] sm:$0xff]
    %v28 = vld [vmem:[%s1 + $0x38] sm:$0xff]
    %v29 = vld [vmem:[%s1 + $0x40] sm:$0x1]
    %vm30 = vcmask 531456
    %v32 = vsel %vm30, %v12, 0
    %v35 = vsel %vm30, %v13, 0
    %v38 = vsel %vm30, %v14, 0
    %v41 = vsel %vm30, %v15, 0
    %v44 = vsel %vm30, %v16, 0
    %v47 = vsel %vm30, %v17, 0
    %v50 = vsel %vm30, %v18, 0
    %v53 = vsel %vm30, %v19, 0
    %v56 = vsel %vm30, %v20, 0
    %vm58 = vcmask 1040384
    %v60 = vsel %vm58, %v29, 0
    %62 = vmatprep.subr.mxu0 0.0
    %63 = vmatpush1.msra.mxu0 0.0
    %64 = vmatprep.subr.mxu0 0.0
    %65 = vmatpush1.msra.mxu0 0.0
    %66 = vmatprep.subr.mxu0 0.0
    %67 = vmatpush1.msra.mxu0 0.0
    %68 = vmatprep.subr.mxu0 0.0
    %69 = vmatpush1.msra.mxu0 0.0
    %70 = vmatprep.subr.mxu0 0.0
    %71 = vmatpush1.msra.mxu0 0.0
    %72 = vmatprep.subr.mxu0 0.0
    %73 = vmatpush1.msra.mxu0 0.0
    %74 = vmatprep.subr.mxu0 0.0
    %75 = vmatpush1.msra.mxu0 0.0
    %76 = vmatprep.subr.mxu0 0.0
    %77 = vmatpush1.msra.mxu0 %v60
    %78 = vmatprep.subr.mxu0 0.0
    %79 = vmatpush1.msra.mxu0 %v28
    %80 = vmatprep.subr.mxu0 0.0
    %81 = vmatpush1.msra.mxu0 %v27
    %82 = vmatprep.subr.mxu0 0.0
    %83 = vmatpush1.msra.mxu0 %v26
    %84 = vmatprep.subr.mxu0 0.0
    %85 = vmatpush1.msra.mxu0 %v25
    %86 = vmatprep.subr.mxu0 0.0
    %87 = vmatpush1.msra.mxu0 %v24
    %88 = vmatprep.subr.mxu0 0.0
    %89 = vmatpush1.msra.mxu0 %v23
    %90 = vmatprep.subr.mxu0 0.0
    %91 = vmatpush1.msra.mxu0 %v22
    %92 = vmatprep.subr.mxu0 0.0
    %93 = vmatpush1.msra.mxu0 %v21
    %94 = vmatprep.subr.mxu0 0.0
    %95 = vmatpush2.msra.mxu0 0.0
    %96 = vmatprep.subr.mxu0 0.0
    %97 = vmatpush2.msra.mxu0 0.0
    %98 = vmatprep.subr.mxu0 0.0
    %99 = vmatpush2.msra.mxu0 0.0
    %100 = vmatprep.subr.mxu0 0.0
    %101 = vmatpush2.msra.mxu0 0.0
    %102 = vmatprep.subr.mxu0 0.0
    %103 = vmatpush2.msra.mxu0 0.0
    %104 = vmatprep.subr.mxu0 0.0
    %105 = vmatpush2.msra.mxu0 0.0
    %106 = vmatprep.subr.mxu0 0.0
    %107 = vmatpush2.msra.mxu0 0.0
    %108 = vmatprep.subr.mxu0 0.0
    %109 = vmatpush2.msra.mxu0 0.0
    %110 = vmatprep.subr.mxu0 0.0
    %111 = vmatpush2.msra.mxu0 0.0
    %112 = vmatprep.subr.mxu0 0.0
    %113 = vmatpush2.msra.mxu0 0.0
    %114 = vmatprep.subr.mxu0 0.0
    %115 = vmatpush2.msra.mxu0 0.0
    %116 = vmatprep.subr.mxu0 0.0
    %117 = vmatpush2.msra.mxu0 0.0
    %118 = vmatprep.subr.mxu0 0.0
    %119 = vmatpush2.msra.mxu0 0.0
    %120 = vmatprep.subr.mxu0 0.0
    %121 = vmatpush2.msra.mxu0 0.0
    %122 = vmatprep.subr.mxu0 0.0
    %123 = vmatpush2.msra.mxu0 0.0
    %124 = vmatprep.subr.mxu0 0.0
    %125 = vmatpush2.msra.mxu0 0.0
    %126 = vmatprep.mubr.f32.mxu0 0.0
    %127 = vmatmul.mubr.f32.gmra.mxu0 %v32
    %v128 = vpop.f32.mrf.mxu0
    %v129 = vadd.f32 0.0, %v128
    %v130 = vpop.f32.mrf.mxu0
    %131 = vmatprep.mubr.f32.mxu0 0.0
    %132 = vmatmul.mubr.f32.gmra.mxu0 %v35
    %v133 = vpop.f32.mrf.mxu0
    %v134 = vadd.f32 0.0, %v133
    %v135 = vpop.f32.mrf.mxu0
    %136 = vmatprep.mubr.f32.mxu0 0.0
    %137 = vmatmul.mubr.f32.gmra.mxu0 %v38
    %v138 = vpop.f32.mrf.mxu0
    %v139 = vadd.f32 0.0, %v138
    %v140 = vpop.f32.mrf.mxu0
    %141 = vmatprep.mubr.f32.mxu0 0.0
    %142 = vmatmul.mubr.f32.gmra.mxu0 %v41
    %v143 = vpop.f32.mrf.mxu0
    %v144 = vadd.f32 0.0, %v143
    %v145 = vpop.f32.mrf.mxu0
    %146 = vmatprep.mubr.f32.mxu0 0.0
    %147 = vmatmul.mubr.f32.gmra.mxu0 %v44
    %v148 = vpop.f32.mrf.mxu0
    %v149 = vadd.f32 0.0, %v148
    %v150 = vpop.f32.mrf.mxu0
    %151 = vmatprep.mubr.f32.mxu0 0.0
    %152 = vmatmul.mubr.f32.gmra.mxu0 %v47
    %v153 = vpop.f32.mrf.mxu0
    %v154 = vadd.f32 0.0, %v153
    %v155 = vpop.f32.mrf.mxu0
    %156 = vmatprep.mubr.f32.mxu0 0.0
    %157 = vmatmul.mubr.f32.gmra.mxu0 %v50
    %v158 = vpop.f32.mrf.mxu0
    %v159 = vadd.f32 0.0, %v158
    %v160 = vpop.f32.mrf.mxu0
    %161 = vmatprep.mubr.f32.mxu0 0.0
    %162 = vmatmul.mubr.f32.gmra.mxu0 %v53
    %v163 = vpop.f32.mrf.mxu0
    %v164 = vadd.f32 0.0, %v163
    %v165 = vpop.f32.mrf.mxu0
    %166 = vmatprep.mubr.f32.mxu0 0.0
    %167 = vmatmul.mubr.f32.gmra.mxu0 %v56
    %v168 = vpop.f32.mrf.mxu0
    %v169 = vadd.f32 0.0, %v168
    %v170 = vpop.f32.mrf.mxu0
    %171 = vdwg.mxu0
    %v173 = vcombine.high %v129, %v129
    %v175 = vunpack.c.l.s4 1966171168
    %v176 = vunpack.c.0.s8 %v175
    %v177 = vlaneseq
    %v178 = vshrl.u32 %v177, 7
    %v179 = vsub.s32 %v176, %v178
    %v180 = vrot.slane %v129, %v179
    %v182 = vunpack.c.l.s4 1966171168
    %v183 = vunpack.c.0.s8 %v182
    %v184 = vlaneseq
    %v185 = vshrl.u32 %v184, 7
    %v186 = vsub.s32 %v183, %v185
    %v187 = vrot.slane %v173, %v186
    %v188 = vcombine.high %v180, %v180
    %v189 = vcombine.high %v187, %v187
    %v191 = vunpack.c.l.s4 1966171168
    %v192 = vunpack.c.0.s8 %v191
    %v193 = vlaneseq
    %v194 = vshrl.u32 %v193, 7
    %v195 = vsub.s32 %v192, %v194
    %v196 = vrot.slane %v180, %v195
    %v198 = vunpack.c.l.s4 1966171168
    %v199 = vunpack.c.0.s8 %v198
    %v200 = vlaneseq
    %v201 = vshrl.u32 %v200, 7
    %v202 = vsub.s32 %v199, %v201
    %v203 = vrot.slane %v187, %v202
    %v205 = vunpack.c.l.s4 1966171168
    %v206 = vunpack.c.0.s8 %v205
    %v207 = vlaneseq
    %v208 = vshrl.u32 %v207, 7
    %v209 = vsub.s32 %v206, %v208
    %v210 = vrot.slane %v188, %v209
    %v212 = vunpack.c.l.s4 1966171168
    %v213 = vunpack.c.0.s8 %v212
    %v214 = vlaneseq
    %v215 = vshrl.u32 %v214, 7
    %v216 = vsub.s32 %v213, %v215
    %v217 = vrot.slane %v189, %v216
    %v218 = vcombine.high %v196, %v196
    %v219 = vcombine.high %v203, %v203
    %v220 = vcombine.high %v210, %v210
    %v221 = vcombine.high %v217, %v217
    %v222 = vlaneseq
    %v223 = vshrl.u32 %v222, 7
    %v224 = vsub.s32 0, %v223
    %v225 = vrot.slane %v196, %v224
    %v226 = vlaneseq
    %v227 = vshrl.u32 %v226, 7
    %v228 = vsub.s32 0, %v227
    %v229 = vrot.slane %v210, %v228
    %v230 = vlaneseq
    %v231 = vshrl.u32 %v230, 7
    %v232 = vsub.s32 0, %v231
    %v233 = vrot.slane %v218, %v232
    %v234 = vlaneseq
    %v235 = vshrl.u32 %v234, 7
    %v236 = vsub.s32 0, %v235
    %v237 = vrot.slane %v220, %v236
    %v238 = vlaneseq
    %v239 = vshrl.u32 %v238, 7
    %v240 = vsub.s32 0, %v239
    %v241 = vrot.slane %v203, %v240
    %v242 = vlaneseq
    %v243 = vshrl.u32 %v242, 7
    %v244 = vsub.s32 0, %v243
    %v245 = vrot.slane %v217, %v244
    %v246 = vlaneseq
    %v247 = vshrl.u32 %v246, 7
    %v248 = vsub.s32 0, %v247
    %v249 = vrot.slane %v219, %v248
    %v250 = vlaneseq
    %v251 = vshrl.u32 %v250, 7
    %v252 = vsub.s32 0, %v251
    %v253 = vrot.slane %v221, %v252
    %270 = vrot.lane.b32.xlu0 %v134, 112
    %v271 = vpop.permute.xlu0 %270
    %272 = vrot.lane.b32.xlu0 %v139, 112
    %v273 = vpop.permute.xlu0 %272
    %274 = vrot.lane.b32.xlu0 %v144, 112
    %v275 = vpop.permute.xlu0 %274
    %276 = vrot.lane.b32.xlu0 %v149, 112
    %v277 = vpop.permute.xlu0 %276
    %278 = vrot.lane.b32.xlu0 %v154, 112
    %v279 = vpop.permute.xlu0 %278
    %280 = vrot.lane.b32.xlu0 %v159, 112
    %v281 = vpop.permute.xlu0 %280
    %282 = vrot.lane.b32.xlu0 %v164, 112
    %v283 = vpop.permute.xlu0 %282
    %284 = vrot.lane.b32.xlu0 %v169, 112
    %v285 = vpop.permute.xlu0 %284
    %v294 = vmul.f32 %v225, %v271
    %v295 = vmul.f32 %v229, %v273
    %v296 = vmul.f32 %v233, %v275
    %v297 = vmul.f32 %v237, %v277
    %v298 = vmul.f32 %v241, %v279
    %v299 = vmul.f32 %v245, %v281
    %v300 = vmul.f32 %v249, %v283
    %v301 = vmul.f32 %v253, %v285
    %vm302 = vcmask 130048
    %v303 = vsel %vm302, %v294, 0.0
    %304 = vadd.xlane.f32.xlu0 %v303
    %v305 = vpop.xlane.xlu0 %304
    %v306 = vsel %vm302, %v295, 0.0
    %307 = vadd.xlane.f32.xlu0 %v306
    %v308 = vpop.xlane.xlu0 %307
    %v309 = vsel %vm302, %v296, 0.0
    %310 = vadd.xlane.f32.xlu0 %v309
    %v311 = vpop.xlane.xlu0 %310
    %v312 = vsel %vm302, %v297, 0.0
    %313 = vadd.xlane.f32.xlu0 %v312
    %v314 = vpop.xlane.xlu0 %313
    %v315 = vsel %vm302, %v298, 0.0
    %316 = vadd.xlane.f32.xlu0 %v315
    %v317 = vpop.xlane.xlu0 %316
    %v318 = vsel %vm302, %v299, 0.0
    %319 = vadd.xlane.f32.xlu0 %v318
    %v320 = vpop.xlane.xlu0 %319
    %v321 = vsel %vm302, %v300, 0.0
    %322 = vadd.xlane.f32.xlu0 %v321
    %v323 = vpop.xlane.xlu0 %322
    %v324 = vsel %vm302, %v301, 0.0
    %325 = vadd.xlane.f32.xlu0 %v324
    %v326 = vpop.xlane.xlu0 %325
    %v335 = vlaneseq
    %v336 = vand.u32 %v335, 127
    %v337 = vlaneseq
    %v338 = vshrl.u32 %v337, 7
    %v339 = vsub.s32 %v336, %v338
    %v340 = vrot.slane %v305, %v339
    %v341 = vlaneseq
    %v342 = vshrl.u32 %v341, 7
    %v343 = vsub.s32 %v336, %v342
    %v344 = vrot.slane %v308, %v343
    %v345 = vlaneseq
    %v346 = vshrl.u32 %v345, 7
    %v347 = vsub.s32 %v336, %v346
    %v348 = vrot.slane %v311, %v347
    %v349 = vlaneseq
    %v350 = vshrl.u32 %v349, 7
    %v351 = vsub.s32 %v336, %v350
    %v352 = vrot.slane %v314, %v351
    %v353 = vlaneseq
    %v354 = vshrl.u32 %v353, 7
    %v355 = vsub.s32 %v336, %v354
    %v356 = vrot.slane %v317, %v355
    %v357 = vlaneseq
    %v358 = vshrl.u32 %v357, 7
    %v359 = vsub.s32 %v336, %v358
    %v360 = vrot.slane %v320, %v359
    %v361 = vlaneseq
    %v362 = vshrl.u32 %v361, 7
    %v363 = vsub.s32 %v336, %v362
    %v364 = vrot.slane %v323, %v363
    %v365 = vlaneseq
    %v366 = vshrl.u32 %v365, 7
    %v367 = vsub.s32 %v336, %v366
    %v368 = vrot.slane %v326, %v367
    %vm369 = vcmask 1041409
    %v370 = vsel %vm369, %v344, %v340
    %vm371 = vcmask 1042434
    %v372 = vsel %vm371, %v348, %v370
    %vm373 = vcmask 1043459
    %v374 = vsel %vm373, %v352, %v372
    %vm375 = vcmask 1044484
    %v376 = vsel %vm375, %v356, %v374
    %vm377 = vcmask 1045509
    %v378 = vsel %vm377, %v360, %v376
    %vm379 = vcmask 1046534
    %v380 = vsel %vm379, %v364, %v378
    %vm381 = vcmask 1047559
    %v382 = vsel %vm381, %v368, %v380
    %vm384 = vcmask 64512
    %v385 = vsel %vm384, %v382, -inf
    %386 = vmax.xlane.f32.xlu0 %v385
    %v387 = vpop.xlane.xlu0 %386
    %v389 = vlaneseq
    %v390 = vshrl.u32 %v389, 7
    %v391 = vsub.s32 0, %v390
    %v392 = vrot.slane %v387, %v391
    %v393 = vlaneseq
    %v394 = vshrl.u32 %v393, 7
    %v395 = vsub.s32 1, %v394
    %v396 = vrot.slane %v387, %v395
    %v397 = vlaneseq
    %v398 = vshrl.u32 %v397, 7
    %v399 = vsub.s32 2, %v398
    %v400 = vrot.slane %v387, %v399
    %v401 = vlaneseq
    %v402 = vshrl.u32 %v401, 7
    %v403 = vsub.s32 3, %v402
    %v404 = vrot.slane %v387, %v403
    %v405 = vlaneseq
    %v406 = vshrl.u32 %v405, 7
    %v407 = vsub.s32 4, %v406
    %v408 = vrot.slane %v387, %v407
    %v409 = vlaneseq
    %v410 = vshrl.u32 %v409, 7
    %v411 = vsub.s32 5, %v410
    %v412 = vrot.slane %v387, %v411
    %v413 = vlaneseq
    %v414 = vshrl.u32 %v413, 7
    %v415 = vsub.s32 6, %v414
    %v416 = vrot.slane %v387, %v415
    %v417 = vlaneseq
    %v418 = vshrl.u32 %v417, 7
    %v419 = vsub.s32 7, %v418
    %v420 = vrot.slane %v387, %v419
    %v429 = vsub.f32 %v305, %v392
    %v430 = vsub.f32 %v308, %v396
    %v431 = vsub.f32 %v311, %v400
    %v432 = vsub.f32 %v314, %v404
    %v433 = vsub.f32 %v317, %v408
    %v434 = vsub.f32 %v320, %v412
    %v435 = vsub.f32 %v323, %v416
    %v436 = vsub.f32 %v326, %v420
    %v437 = vmul.f32 %v429, 1.442695
    %v438 = vpow.pop %v437
    %v439 = vmul.f32 %v430, 1.442695
    %v440 = vpow.pop %v439
    %v441 = vmul.f32 %v431, 1.442695
    %v442 = vpow.pop %v441
    %v443 = vmul.f32 %v432, 1.442695
    %v444 = vpow.pop %v443
    %v445 = vmul.f32 %v433, 1.442695
    %v446 = vpow.pop %v445
    %v447 = vmul.f32 %v434, 1.442695
    %v448 = vpow.pop %v447
    %v449 = vmul.f32 %v435, 1.442695
    %v450 = vpow.pop %v449
    %v451 = vmul.f32 %v436, 1.442695
    %v452 = vpow.pop %v451
    %461 = vset.pattern.permute.xlu0 0
    %462 = vperm.xlu0 %461, %v438
    %v463 = vpop.permute.xlu0 %462
    %464 = vset.pattern.permute.xlu0 0
    %465 = vperm.xlu0 %464, %v440
    %v466 = vpop.permute.xlu0 %465
    %467 = vset.pattern.permute.xlu0 0
    %468 = vperm.xlu0 %467, %v442
    %v469 = vpop.permute.xlu0 %468
    %470 = vset.pattern.permute.xlu0 0
    %471 = vperm.xlu0 %470, %v444
    %v472 = vpop.permute.xlu0 %471
    %473 = vset.pattern.permute.xlu0 0
    %474 = vperm.xlu0 %473, %v446
    %v475 = vpop.permute.xlu0 %474
    %476 = vset.pattern.permute.xlu0 0
    %477 = vperm.xlu0 %476, %v448
    %v478 = vpop.permute.xlu0 %477
    %479 = vset.pattern.permute.xlu0 0
    %480 = vperm.xlu0 %479, %v450
    %v481 = vpop.permute.xlu0 %480
    %482 = vset.pattern.permute.xlu0 0
    %483 = vperm.xlu0 %482, %v452
    %v484 = vpop.permute.xlu0 %483
    %v485 = vlaneseq
    %v486 = vshrl.u32 %v485, 7
    %v487 = vsub.s32 %v336, %v486
    %v488 = vrot.slane %v463, %v487
    %v489 = vlaneseq
    %v490 = vshrl.u32 %v489, 7
    %v491 = vsub.s32 %v336, %v490
    %v492 = vrot.slane %v466, %v491
    %v493 = vlaneseq
    %v494 = vshrl.u32 %v493, 7
    %v495 = vsub.s32 %v336, %v494
    %v496 = vrot.slane %v469, %v495
    %v497 = vlaneseq
    %v498 = vshrl.u32 %v497, 7
    %v499 = vsub.s32 %v336, %v498
    %v500 = vrot.slane %v472, %v499
    %v501 = vlaneseq
    %v502 = vshrl.u32 %v501, 7
    %v503 = vsub.s32 %v336, %v502
    %v504 = vrot.slane %v475, %v503
    %v505 = vlaneseq
    %v506 = vshrl.u32 %v505, 7
    %v507 = vsub.s32 %v336, %v506
    %v508 = vrot.slane %v478, %v507
    %v509 = vlaneseq
    %v510 = vshrl.u32 %v509, 7
    %v511 = vsub.s32 %v336, %v510
    %v512 = vrot.slane %v481, %v511
    %v513 = vlaneseq
    %v514 = vshrl.u32 %v513, 7
    %v515 = vsub.s32 %v336, %v514
    %v516 = vrot.slane %v484, %v515
    %v517 = vsel %vm369, %v492, %v488
    %v518 = vsel %vm371, %v496, %v517
    %v519 = vsel %vm373, %v500, %v518
    %v520 = vsel %vm375, %v504, %v519
    %v521 = vsel %vm377, %v508, %v520
    %v522 = vsel %vm379, %v512, %v521
    %v523 = vsel %vm381, %v516, %v522
    %v525 = vsel %vm384, %v523, 0.0
    %526 = vadd.xlane.f32.xlu0 %v525
    %v527 = vpop.xlane.xlu0 %526
    %v529 = vlaneseq
    %v530 = vshrl.u32 %v529, 7
    %v531 = vsub.s32 0, %v530
    %v532 = vrot.slane %v527, %v531
    %v533 = vlaneseq
    %v534 = vshrl.u32 %v533, 7
    %v535 = vsub.s32 1, %v534
    %v536 = vrot.slane %v527, %v535
    %v537 = vlaneseq
    %v538 = vshrl.u32 %v537, 7
    %v539 = vsub.s32 2, %v538
    %v540 = vrot.slane %v527, %v539
    %v541 = vlaneseq
    %v542 = vshrl.u32 %v541, 7
    %v543 = vsub.s32 3, %v542
    %v544 = vrot.slane %v527, %v543
    %v545 = vlaneseq
    %v546 = vshrl.u32 %v545, 7
    %v547 = vsub.s32 4, %v546
    %v548 = vrot.slane %v527, %v547
    %v549 = vlaneseq
    %v550 = vshrl.u32 %v549, 7
    %v551 = vsub.s32 5, %v550
    %v552 = vrot.slane %v527, %v551
    %v553 = vlaneseq
    %v554 = vshrl.u32 %v553, 7
    %v555 = vsub.s32 6, %v554
    %v556 = vrot.slane %v527, %v555
    %v557 = vlaneseq
    %v558 = vshrl.u32 %v557, 7
    %v559 = vsub.s32 7, %v558
    %v560 = vrot.slane %v527, %v559
    %v569 = vrcp.pop %v532
    %v570 = vmul.f32 %v438, %v569
    %v571 = vrcp.pop %v536
    %v572 = vmul.f32 %v440, %v571
    %v573 = vrcp.pop %v540
    %v574 = vmul.f32 %v442, %v573
    %v575 = vrcp.pop %v544
    %v576 = vmul.f32 %v444, %v575
    %v577 = vrcp.pop %v548
    %v578 = vmul.f32 %v446, %v577
    %v579 = vrcp.pop %v552
    %v580 = vmul.f32 %v448, %v579
    %v581 = vrcp.pop %v556
    %v582 = vmul.f32 %v450, %v581
    %v583 = vrcp.pop %v560
    %v584 = vmul.f32 %v452, %v583
    %586 = vset.pattern.permute.xlu0 0
    %587 = vperm.xlu0 %586, %v570
    %v588 = vpop.permute.xlu0 %587
    %591 = vset.pattern.permute.xlu0 0
    %592 = vperm.xlu0 %591, %v572
    %v593 = vpop.permute.xlu0 %592
    %596 = vset.pattern.permute.xlu0 0
    %597 = vperm.xlu0 %596, %v574
    %v598 = vpop.permute.xlu0 %597
    %601 = vset.pattern.permute.xlu0 0
    %602 = vperm.xlu0 %601, %v576
    %v603 = vpop.permute.xlu0 %602
    %606 = vset.pattern.permute.xlu0 0
    %607 = vperm.xlu0 %606, %v578
    %v608 = vpop.permute.xlu0 %607
    %611 = vset.pattern.permute.xlu0 0
    %612 = vperm.xlu0 %611, %v580
    %v613 = vpop.permute.xlu0 %612
    %616 = vset.pattern.permute.xlu0 0
    %617 = vperm.xlu0 %616, %v582
    %v618 = vpop.permute.xlu0 %617
    %621 = vset.pattern.permute.xlu0 0
    %622 = vperm.xlu0 %621, %v584
    %v623 = vpop.permute.xlu0 %622
    %v625 = vmul.f32 %v588, %v134
    %v626 = vmul.f32 %v593, %v139
    %v627 = vmul.f32 %v598, %v144
    %v628 = vmul.f32 %v603, %v149
    %v629 = vmul.f32 %v608, %v154
    %v630 = vmul.f32 %v613, %v159
    %v631 = vmul.f32 %v618, %v164
    %v632 = vmul.f32 %v623, %v169
    %vm633 = vcmask 523520
    %v634 = vsel %vm633, %v625, 0.0
    %v635 = vrot.slane %v634, 4
    %v636 = vadd.f32 %v634, %v635
    %v637 = vrot.slane %v636, 2
    %v638 = vadd.f32 %v636, %v637
    %v639 = vrot.slane %v638, 1
    %v640 = vadd.f32 %v638, %v639
    %v641 = vsel %vm633, %v626, 0.0
    %v642 = vrot.slane %v641, 4
    %v643 = vadd.f32 %v641, %v642
    %v644 = vrot.slane %v643, 2
    %v645 = vadd.f32 %v643, %v644
    %v646 = vrot.slane %v645, 1
    %v647 = vadd.f32 %v645, %v646
    %v648 = vsel %vm633, %v627, 0.0
    %v649 = vrot.slane %v648, 4
    %v650 = vadd.f32 %v648, %v649
    %v651 = vrot.slane %v650, 2
    %v652 = vadd.f32 %v650, %v651
    %v653 = vrot.slane %v652, 1
    %v654 = vadd.f32 %v652, %v653
    %v655 = vsel %vm633, %v628, 0.0
    %v656 = vrot.slane %v655, 4
    %v657 = vadd.f32 %v655, %v656
    %v658 = vrot.slane %v657, 2
    %v659 = vadd.f32 %v657, %v658
    %v660 = vrot.slane %v659, 1
    %v661 = vadd.f32 %v659, %v660
    %v662 = vsel %vm633, %v629, 0.0
    %v663 = vrot.slane %v662, 4
    %v664 = vadd.f32 %v662, %v663
    %v665 = vrot.slane %v664, 2
    %v666 = vadd.f32 %v664, %v665
    %v667 = vrot.slane %v666, 1
    %v668 = vadd.f32 %v666, %v667
    %v669 = vsel %vm633, %v630, 0.0
    %v670 = vrot.slane %v669, 4
    %v671 = vadd.f32 %v669, %v670
    %v672 = vrot.slane %v671, 2
    %v673 = vadd.f32 %v671, %v672
    %v674 = vrot.slane %v673, 1
    %v675 = vadd.f32 %v673, %v674
    %v676 = vsel %vm633, %v631, 0.0
    %v677 = vrot.slane %v676, 4
    %v678 = vadd.f32 %v676, %v677
    %v679 = vrot.slane %v678, 2
    %v680 = vadd.f32 %v678, %v679
    %v681 = vrot.slane %v680, 1
    %v682 = vadd.f32 %v680, %v681
    %v683 = vsel %vm633, %v632, 0.0
    %v684 = vrot.slane %v683, 4
    %v685 = vadd.f32 %v683, %v684
    %v686 = vrot.slane %v685, 2
    %v687 = vadd.f32 %v685, %v686
    %v688 = vrot.slane %v687, 1
    %v689 = vadd.f32 %v687, %v688
    %v698 = vsel %vm369, %v647, %v640
    %v699 = vsel %vm371, %v654, %v698
    %v700 = vsel %vm373, %v661, %v699
    %v701 = vsel %vm375, %v668, %v700
    %v702 = vsel %vm377, %v675, %v701
    %v703 = vsel %vm379, %v682, %v702
    %v704 = vsel %vm381, %v689, %v703
    %705 = vrot.lane.b32.xlu0 %v704, 96
    %v706 = vpop.permute.xlu0 %705
    %v708 = vadd.s32 %v336, 4294967264
    %v709 = vlaneseq
    %v710 = vshrl.u32 %v709, 7
    %v711 = vsub.s32 %v708, %v710
    %v712 = vrot.slane %v588, %v711
    %v713 = vlaneseq
    %v714 = vshrl.u32 %v713, 7
    %v715 = vsub.s32 %v708, %v714
    %v716 = vrot.slane %v593, %v715
    %v717 = vlaneseq
    %v718 = vshrl.u32 %v717, 7
    %v719 = vsub.s32 %v708, %v718
    %v720 = vrot.slane %v598, %v719
    %v721 = vlaneseq
    %v722 = vshrl.u32 %v721, 7
    %v723 = vsub.s32 %v708, %v722
    %v724 = vrot.slane %v603, %v723
    %v725 = vlaneseq
    %v726 = vshrl.u32 %v725, 7
    %v727 = vsub.s32 %v708, %v726
    %v728 = vrot.slane %v608, %v727
    %v729 = vlaneseq
    %v730 = vshrl.u32 %v729, 7
    %v731 = vsub.s32 %v708, %v730
    %v732 = vrot.slane %v613, %v731
    %v733 = vlaneseq
    %v734 = vshrl.u32 %v733, 7
    %v735 = vsub.s32 %v708, %v734
    %v736 = vrot.slane %v618, %v735
    %v737 = vlaneseq
    %v738 = vshrl.u32 %v737, 7
    %v739 = vsub.s32 %v708, %v738
    %v740 = vrot.slane %v623, %v739
    %v741 = vsel %vm369, %v716, %v712
    %v742 = vsel %vm371, %v720, %v741
    %v743 = vsel %vm373, %v724, %v742
    %v744 = vsel %vm375, %v728, %v743
    %v745 = vsel %vm377, %v732, %v744
    %v746 = vsel %vm379, %v736, %v745
    %v747 = vsel %vm381, %v740, %v746
    %vm749 = vcmask 261120
    %v750 = vsel %vm749, %v706, %v747
    %vm751 = vcmask 326656
    %v752 = vsel %vm751, %v750, 0.0
    %753 = vst [vmem:[#allocation2] sm:$0xff] %v752
    // Predicated region
    $region10: #{tpu_custom_call.1} parent=1 // pred_check
      _
    $region11: #{tpu_custom_call.1} parent=1 // pred_check_branch
      %755 = sbr.rel (0) target = $region13
    $region12: #{tpu_custom_call.1} parent=1 // pred_region
      %s757 = ssub.s32 128, 128
      %758 = vsyncadd [#allocation3], %s757
      %s760 = sshll.u32 [#allocation2], 4
      %s761 = int_to_ptr.vmem [resolvable:$true] %s760
      %763 = dma.vmem_to_hbm [thread:$0]  %s761, 128, %s2, [#allocation3]
    $region13: #{tpu_custom_call.1} parent=1 // pred_fallthru
      _
    // Predicated region
    $region14: #{tpu_custom_call.1} parent=1 // pred_check
      _
    $region15: #{tpu_custom_call.1} parent=1 // pred_check_branch
      %765 = sbr.rel (0) target = $region17
    $region16: #{tpu_custom_call.1} parent=1 // pred_region
      %766 = dma.done [#allocation3], 128
    $region17: #{tpu_custom_call.1} parent=1 // pred_fallthru
      _
    %767 = vsyncpa [#allocation3], 1

</llo_original>
